<compile_context>
chip_gen: v6e
topology: v6e:2x2x1
jax: 0.10.0
libtpu: 0.0.40
codegen_flags: <defaults>
</compile_context>

<pallas_src>
import functools
import math

import jax
import jax.numpy as jnp
from jax.experimental import pallas as pl
from jax.experimental.pallas import tpu as pltpu


# ---------------------------------------------------------------------------
# Pass 1: folded matmul chain + per-tile BatchNorm partial statistics.
# ---------------------------------------------------------------------------
def _ea_matmul_kernel(x_ref, wa_ref, ba_ref, wb_ref, h_ref, stat_ref, *, hw, tile):
    x = x_ref[...].astype(jnp.float32)                                      # (C, T)

    # folded conv1 + linear_0:  logits = (W0 @ W1) x + W0 b1
    logits = jnp.dot(wa_ref[...], x, preferred_element_type=jnp.float32)    # (K, T)
    logits = logits + ba_ref[...]

    # softmax over k (dim=1 of the (b, k, n) tensor in the torch code)
    m = jnp.max(logits, axis=0, keepdims=True)
    p = jnp.exp(logits - m)
    s1 = jnp.sum(p, axis=0, keepdims=True)
    attn = p * pl.reciprocal(s1, approx=True)
    # second ("double") normalization over k, exactly as in the reference
    s2 = 1e-09 + jnp.sum(attn, axis=0, keepdims=True)
    attn = attn * pl.reciprocal(s2, approx=True)

    # folded linear_1 + conv2[0]:  h = (W2 @ WL1) attn
    h = jnp.dot(wb_ref[...], attn, preferred_element_type=jnp.float32)      # (C, T)
    h_ref[...] = h

    # Per-channel partial sums for training-mode BatchNorm2d.  Mask lanes past
    # the true H*W extent on a ragged last tile (their h values are dropped by
    # the clipped output store, but must not pollute the statistics).
    if hw % tile != 0:
        col = pl.program_id(1) * tile + jax.lax.broadcasted_iota(
            jnp.int32, h.shape, 1)
        h = jnp.where(col < hw, h, 0.0)
    stat_ref[:, 0:1] = jnp.sum(h, axis=1, keepdims=True)                    # E[x]*n
    stat_ref[:, 1:2] = jnp.sum(h * h, axis=1, keepdims=True)                # E[x^2]*n


# ---------------------------------------------------------------------------
# Pass 2: BatchNorm apply + residual + ReLU (purely elementwise, lane-dense).
# ---------------------------------------------------------------------------
def _ea_bn_residual_relu_kernel(h_ref, x_ref, scale_ref, shift_ref, o_ref):
    y = h_ref[...] * scale_ref[...] + shift_ref[...] + x_ref[...].astype(jnp.float32)
    o_ref[...] = jnp.maximum(y, 0.0).astype(o_ref.dtype)


def _pick_tile(c, hw, target_bytes=2 << 20):
    """Largest sensible pixel-tile: full extent if small, else a multiple of 128
    sized so one (C, T) f32 slab is ~target_bytes."""
    if c * hw * 4 <= 2 * target_bytes:
        return hw
    t = (target_bytes // (c * 4)) // 128 * 128
    t = max(256, min(2048, int(t)))
    return hw if t >= hw else t


def external_attention(x_nchw, w_conv1, b_conv1, w_lin0, w_lin1, w_conv2,
                       gamma, beta, *, tile_hw=None):
    """x_nchw: (B, C, H, W) float32 -> (B, C, H, W)."""
    b, c, hh, ww = x_nchw.shape
    hw = hh * ww
    k = w_lin0.shape[0]
    n_total = b * hw
    f32 = jnp.float32

    t = int(tile_hw) if tile_hw is not None else _pick_tile(c, hw)
    j = pl.cdiv(hw, t)

    x3 = x_nchw.reshape(b, c, hw)                       # free reshape, stays NCHW

    # Fold adjacent linear (1x1) maps once (O(K*C*C), negligible vs per-pixel work).
    hi = jax.lax.Precision.HIGHEST
    w0 = w_lin0.astype(f32)
    wa = jnp.dot(w0, w_conv1.astype(f32), precision=hi)                  # (K, C)
    ba = jnp.dot(w0, b_conv1.astype(f32).reshape(c, 1), precision=hi)    # (K, 1)
    wb = jnp.dot(w_conv2.astype(f32), w_lin1.astype(f32), precision=hi)  # (C, K)

    # VMEM budget: double-buffered x/h/out slabs + resident weights + live intermediates.
    f32b = 4
    tile_bytes = c * t * f32b
    weight_bytes = (2 * c * k + k) * f32b
    interm_bytes = (3 * k * t + 2 * c * t) * f32b
    est = 6 * tile_bytes + 2 * weight_bytes + interm_bytes
    vmem_limit = int(min(max(2 * est, 32 << 20), 48 << 20))

    const = lambda shape: pl.BlockSpec(shape, lambda bi, ji: (0, 0))
    slab = pl.BlockSpec((None, c, t), lambda bi, ji: (bi, 0, ji))
    stat = pl.BlockSpec((None, None, c, 2), lambda bi, ji: (bi, ji, 0, 0))

    cost1 = pl.CostEstimate(
        flops=4 * n_total * c * k + 8 * n_total * k,
        transcendentals=n_total * k + 2 * n_total,
        bytes_accessed=(2 * n_total * c + 2 * c * k + k) * f32b,
    )

    h, stats = pl.pallas_call(
        functools.partial(_ea_matmul_kernel, hw=hw, tile=t),
        grid=(b, j),
        in_specs=[
            slab,                 # x
            const((k, c)),        # folded conv1 + linear_0 weight
            const((k, 1)),        # folded conv1 bias
            const((c, k)),        # folded linear_1 + conv2[0] weight
        ],
        out_specs=[slab, stat],
        out_shape=[
            jax.ShapeDtypeStruct((b, c, hw), jnp.float32),   # pre-BN features
            jax.ShapeDtypeStruct((b, j, c, 2), jnp.float32),  # per-tile [sum, sum_sq]
        ],
        compiler_params=pltpu.CompilerParams(
            dimension_semantics=("parallel", "parallel"),
            vmem_limit_bytes=vmem_limit,
        ),
        cost_estimate=cost1,
    )(x3, wa, ba, wb)

    # Finalize training-mode BatchNorm2d stats (biased variance, eps=1e-5) and
    # fold into a per-channel affine: y = h*scale + shift.
    tot = jnp.sum(stats, axis=(0, 1))                    # (C, 2)
    mean = tot[:, 0:1] / n_total                         # (C, 1)
    ex2 = tot[:, 1:2] / n_total                          # (C, 1)
    var = ex2 - mean * mean
    inv_std = jax.lax.rsqrt(var + 1e-5)
    scale = gamma.reshape(c, 1).astype(f32) * inv_std
    shift = beta.reshape(c, 1).astype(f32) - mean * scale
    # TODO(synk): BatchNorm running_mean/running_var updates are module state,
    # not part of the returned forward value, so they are not produced here.

    cost2 = pl.CostEstimate(
        flops=4 * n_total * c,
        transcendentals=0,
        bytes_accessed=3 * n_total * c * f32b,
    )

    out = pl.pallas_call(
        _ea_bn_residual_relu_kernel,
        grid=(b, j),
        in_specs=[slab, slab, const((c, 1)), const((c, 1))],
        out_specs=slab,
        out_shape=jax.ShapeDtypeStruct((b, c, hw), x_nchw.dtype),
        compiler_params=pltpu.CompilerParams(
            dimension_semantics=("parallel", "parallel"),
            vmem_limit_bytes=vmem_limit,
        ),
        cost_estimate=cost2,
    )(h, x3, scale, shift)

    return out.reshape(b, c, hh, ww)


def init_params(key, c, k=64):
    """Deterministic synthetic init mirroring the module's init_weights()."""
    k1, k2, k3, k4 = jax.random.split(key, 4)
    # conv1: Conv2d(c, c, 1) -> std sqrt(2 / (1*1*c)); bias small uniform
    w_conv1 = jax.random.normal(k1, (c, c), jnp.float32) * math.sqrt(2.0 / c)
    b_conv1 = jax.random.uniform(k2, (c,), jnp.float32, -1.0, 1.0) / math.sqrt(c)
    # linear_0 / linear_1 share storage (linear_1.weight = linear_0.weight.permute);
    # after init_weights the shared storage ends up ~ N(0, sqrt(2/c)).
    w_lin0 = jax.random.normal(k3, (k, c), jnp.float32) * math.sqrt(2.0 / c)   # (K, C)
    w_lin1 = w_lin0.T                                                          # (C, K), tied
    # conv2[0]: Conv2d(c, c, 1, bias=False) -> std sqrt(2 / c)
    w_conv2 = jax.random.normal(k4, (c, c), jnp.float32) * math.sqrt(2.0 / c)
    # BatchNorm2d: weight=1, bias=0
    gamma = jnp.ones((c,), jnp.float32)
    beta = jnp.zeros((c,), jnp.float32)
    return w_conv1, b_conv1, w_lin0, w_lin1, w_conv2, gamma, beta


if __name__ == "__main__":
    key = jax.random.PRNGKey(0)
    kx, kp = jax.random.split(key)

    B, C, H, W = 2, 4, 16, 16
    x = jax.random.normal(kx, (B, C, H, W), jnp.float32)
    params = init_params(kp, C, k=64)

    out = jax.jit(external_attention)(x, *params)
    out = jax.block_until_ready(out)
    assert out.shape == (B, C, H, W)
    assert bool(jnp.all(jnp.isfinite(out)))
    assert bool(jnp.all(out >= 0.0))   # ReLU output
    print("KERNEL_OK")
</pallas_src>

<mosaic_0001>
module attributes {stable_mosaic.version = 11 : i64} {
  func.func @_ea_matmul_kernel(%arg0: i32, %arg1: i32, %arg2: memref<1x4x256xf32, #tpu.memory_space<vmem>>, %arg3: memref<64x4xf32, #tpu.memory_space<vmem>>, %arg4: memref<64x1xf32, #tpu.memory_space<vmem>>, %arg5: memref<4x64xf32, #tpu.memory_space<vmem>>, %arg6: memref<1x4x256xf32, #tpu.memory_space<vmem>>, %arg7: memref<1x1x4x2xf32, #tpu.memory_space<vmem>>) attributes {dimension_semantics = [#tpu.dimension_semantics<parallel>, #tpu.dimension_semantics<parallel>], iteration_bounds = array<i64: 2, 1>, scalar_prefetch = 0 : i64, scratch_operands = 0 : i64, tpu.core_type = #tpu.core_type<tc>, window_params = [{transform_indices = @transform_0, window_bounds = array<i64: 1, 4, 256>}, {pipeline_mode = #tpu.pipeline_mode<synchronous>, transform_indices = @transform_1, window_bounds = array<i64: 64, 4>}, {pipeline_mode = #tpu.pipeline_mode<synchronous>, transform_indices = @transform_2, window_bounds = array<i64: 64, 1>}, {pipeline_mode = #tpu.pipeline_mode<synchronous>, transform_indices = @transform_3, window_bounds = array<i64: 4, 64>}, {transform_indices = @transform_4, window_bounds = array<i64: 1, 4, 256>}, {transform_indices = @transform_5, window_bounds = array<i64: 1, 1, 4, 2>}]} {
    %c0 = arith.constant 0 : index
    %c0_0 = arith.constant 0 : index
    %c0_1 = arith.constant 0 : index
    %0 = vector.load %arg2[%c0, %c0_0, %c0_1] : memref<1x4x256xf32, #tpu.memory_space<vmem>>, vector<1x4x256xf32>
    %1 = vector.shape_cast %0 : vector<1x4x256xf32> to vector<4x256xf32>
    %c0_2 = arith.constant 0 : index
    %c0_3 = arith.constant 0 : index
    %2 = vector.load %arg3[%c0_2, %c0_3] : memref<64x4xf32, #tpu.memory_space<vmem>>, vector<64x4xf32>
    %cst = arith.constant dense<0.000000e+00> : vector<64x256xf32>
    %3 = tpu.matmul %2, %1, %cst {dimension_numbers = #tpu.dot_dimension_numbers<[1], [0], [0], [1], [0, 0, 1, 1], [], []>} : vector<64x4xf32>, vector<4x256xf32>, vector<64x256xf32> -> vector<64x256xf32>
    %c0_4 = arith.constant 0 : index
    %c0_5 = arith.constant 0 : index
    %4 = vector.load %arg4[%c0_4, %c0_5] : memref<64x1xf32, #tpu.memory_space<vmem>>, vector<64x1xf32>
    %5 = vector.broadcast %4 : vector<64x1xf32> to vector<64x256xf32>
    %6 = arith.addf %3, %5 : vector<64x256xf32>
    %cst_6 = arith.constant dense<0xFF800000> : vector<256xf32>
    %7 = vector.multi_reduction <maximumf>, %6, %cst_6 [0] : vector<64x256xf32> to vector<256xf32>
    %8 = vector.shape_cast %7 : vector<256xf32> to vector<1x256xf32>
    %9 = vector.broadcast %8 : vector<1x256xf32> to vector<64x256xf32>
    %10 = arith.subf %6, %9 : vector<64x256xf32>
    %11 = math.exp %10 : vector<64x256xf32>
    %cst_7 = arith.constant dense<0.000000e+00> : vector<256xf32>
    %12 = vector.multi_reduction <add>, %11, %cst_7 [0] : vector<64x256xf32> to vector<256xf32>
    %13 = vector.shape_cast %12 : vector<256xf32> to vector<1x256xf32>
    %14 = tpu.reciprocal %13 {approx = true} : vector<1x256xf32> -> vector<1x256xf32>
    %15 = vector.broadcast %14 : vector<1x256xf32> to vector<64x256xf32>
    %16 = arith.mulf %11, %15 : vector<64x256xf32>
    %cst_8 = arith.constant dense<0.000000e+00> : vector<256xf32>
    %17 = vector.multi_reduction <add>, %16, %cst_8 [0] : vector<64x256xf32> to vector<256xf32>
    %18 = vector.shape_cast %17 : vector<256xf32> to vector<1x256xf32>
    %cst_9 = arith.constant 9.99999971E-10 : f32
    %19 = vector.broadcast %cst_9 : f32 to vector<1x256xf32>
    %20 = arith.addf %19, %18 : vector<1x256xf32>
    %21 = tpu.reciprocal %20 {approx = true} : vector<1x256xf32> -> vector<1x256xf32>
    %22 = vector.broadcast %21 : vector<1x256xf32> to vector<64x256xf32>
    %23 = arith.mulf %16, %22 : vector<64x256xf32>
    %c0_10 = arith.constant 0 : index
    %c0_11 = arith.constant 0 : index
    %24 = vector.load %arg5[%c0_10, %c0_11] : memref<4x64xf32, #tpu.memory_space<vmem>>, vector<4x64xf32>
    %cst_12 = arith.constant dense<0.000000e+00> : vector<4x256xf32>
    %25 = tpu.matmul %24, %23, %cst_12 {dimension_numbers = #tpu.dot_dimension_numbers<[1], [0], [0], [1], [0, 0, 1, 1], [], []>} : vector<4x64xf32>, vector<64x256xf32>, vector<4x256xf32> -> vector<4x256xf32>
    %c0_13 = arith.constant 0 : index
    %c0_14 = arith.constant 0 : index
    %c0_15 = arith.constant 0 : index
    %26 = vector.load %arg6[%c0_13, %c0_14, %c0_15] : memref<1x4x256xf32, #tpu.memory_space<vmem>>, vector<1x4x256xf32>
    %27 = vector.shape_cast %26 : vector<1x4x256xf32> to vector<4x256xf32>
    %28 = vector.shape_cast %25 : vector<4x256xf32> to vector<1x4x256xf32>
    tpu.vector_store %arg6[%c0_13, %c0_14, %c0_15], %28 {strides = array<i32>} : memref<1x4x256xf32, #tpu.memory_space<vmem>>, vector<1x4x256xf32>,
    %cst_16 = arith.constant dense<0.000000e+00> : vector<4xf32>
    %29 = vector.multi_reduction <add>, %25, %cst_16 [1] : vector<4x256xf32> to vector<4xf32>
    %30 = vector.shape_cast %29 : vector<4xf32> to vector<4x1xf32>
    %c0_17 = arith.constant 0 : index
    %c0_18 = arith.constant 0 : index
    %c0_19 = arith.constant 0 : index
    %c0_20 = arith.constant 0 : index
    %31 = vector.load %arg7[%c0_17, %c0_18, %c0_19, %c0_20] : memref<1x1x4x2xf32, #tpu.memory_space<vmem>>, vector<1x1x4x1xf32>
    %32 = vector.shape_cast %31 : vector<1x1x4x1xf32> to vector<4x1xf32>
    %33 = vector.shape_cast %30 : vector<4x1xf32> to vector<1x1x4x1xf32>
    tpu.vector_store %arg7[%c0_17, %c0_18, %c0_19, %c0_20], %33 {strides = array<i32>} : memref<1x1x4x2xf32, #tpu.memory_space<vmem>>, vector<1x1x4x1xf32>,
    %34 = arith.mulf %25, %25 : vector<4x256xf32>
    %cst_21 = arith.constant dense<0.000000e+00> : vector<4xf32>
    %35 = vector.multi_reduction <add>, %34, %cst_21 [1] : vector<4x256xf32> to vector<4xf32>
    %36 = vector.shape_cast %35 : vector<4xf32> to vector<4x1xf32>
    %c0_22 = arith.constant 0 : index
    %c0_23 = arith.constant 0 : index
    %c0_24 = arith.constant 0 : index
    %c1 = arith.constant 1 : index
    %37 = vector.load %arg7[%c0_22, %c0_23, %c0_24, %c1] : memref<1x1x4x2xf32, #tpu.memory_space<vmem>>, vector<1x1x4x1xf32>
    %38 = vector.shape_cast %37 : vector<1x1x4x1xf32> to vector<4x1xf32>
    %39 = vector.shape_cast %36 : vector<4x1xf32> to vector<1x1x4x1xf32>
    tpu.vector_store %arg7[%c0_22, %c0_23, %c0_24, %c1], %39 {strides = array<i32>} : memref<1x1x4x2xf32, #tpu.memory_space<vmem>>, vector<1x1x4x1xf32>,
    return
  }
  func.func @transform_0(%arg0: i32, %arg1: i32) -> (i32, i32, i32) {
    %c0_i32 = arith.constant 0 : i32
    %c0_i32_0 = arith.constant 0 : i32
    return %arg0, %c0_i32, %arg1 : i32, i32, i32
  }
  func.func @transform_1(%arg0: i32, %arg1: i32) -> (i32, i32) {
    %c0_i32 = arith.constant 0 : i32
    %c0_i32_0 = arith.constant 0 : i32
    %c0_i32_1 = arith.constant 0 : i32
    return %c0_i32, %c0_i32_0 : i32, i32
  }
  func.func @transform_2(%arg0: i32, %arg1: i32) -> (i32, i32) {
    %c0_i32 = arith.constant 0 : i32
    %c0_i32_0 = arith.constant 0 : i32
    %c0_i32_1 = arith.constant 0 : i32
    return %c0_i32, %c0_i32_0 : i32, i32
  }
  func.func @transform_3(%arg0: i32, %arg1: i32) -> (i32, i32) {
    %c0_i32 = arith.constant 0 : i32
    %c0_i32_0 = arith.constant 0 : i32
    %c0_i32_1 = arith.constant 0 : i32
    return %c0_i32, %c0_i32_0 : i32, i32
  }
  func.func @transform_4(%arg0: i32, %arg1: i32) -> (i32, i32, i32) {
    %c0_i32 = arith.constant 0 : i32
    %c0_i32_0 = arith.constant 0 : i32
    return %arg0, %c0_i32, %arg1 : i32, i32, i32
  }
  func.func @transform_5(%arg0: i32, %arg1: i32) -> (i32, i32, i32, i32) {
    %c0_i32 = arith.constant 0 : i32
    %c0_i32_0 = arith.constant 0 : i32
    %c0_i32_1 = arith.constant 0 : i32
    return %arg0, %arg1, %c0_i32, %c0_i32_0 : i32, i32, i32, i32
  }
}

module attributes {stable_mosaic.version = 11 : i64} {
  func.func @_ea_bn_residual_relu_kernel(%arg0: i32, %arg1: i32, %arg2: memref<1x4x256xf32, #tpu.memory_space<vmem>>, %arg3: memref<1x4x256xf32, #tpu.memory_space<vmem>>, %arg4: memref<4x1xf32, #tpu.memory_space<vmem>>, %arg5: memref<4x1xf32, #tpu.memory_space<vmem>>, %arg6: memref<1x4x256xf32, #tpu.memory_space<vmem>>) attributes {dimension_semantics = [#tpu.dimension_semantics<parallel>, #tpu.dimension_semantics<parallel>], iteration_bounds = array<i64: 2, 1>, scalar_prefetch = 0 : i64, scratch_operands = 0 : i64, tpu.core_type = #tpu.core_type<tc>, window_params = [{transform_indices = @transform_0, window_bounds = array<i64: 1, 4, 256>}, {transform_indices = @transform_1, window_bounds = array<i64: 1, 4, 256>}, {pipeline_mode = #tpu.pipeline_mode<synchronous>, transform_indices = @transform_2, window_bounds = array<i64: 4, 1>}, {pipeline_mode = #tpu.pipeline_mode<synchronous>, transform_indices = @transform_3, window_bounds = array<i64: 4, 1>}, {transform_indices = @transform_4, window_bounds = array<i64: 1, 4, 256>}]} {
    %c0 = arith.constant 0 : index
    %c0_0 = arith.constant 0 : index
    %c0_1 = arith.constant 0 : index
    %0 = vector.load %arg2[%c0, %c0_0, %c0_1] : memref<1x4x256xf32, #tpu.memory_space<vmem>>, vector<1x4x256xf32>
    %1 = vector.shape_cast %0 : vector<1x4x256xf32> to vector<4x256xf32>
    %c0_2 = arith.constant 0 : index
    %c0_3 = arith.constant 0 : index
    %2 = vector.load %arg4[%c0_2, %c0_3] : memref<4x1xf32, #tpu.memory_space<vmem>>, vector<4x1xf32>
    %3 = vector.broadcast %2 : vector<4x1xf32> to vector<4x256xf32>
    %4 = arith.mulf %1, %3 : vector<4x256xf32>
    %c0_4 = arith.constant 0 : index
    %c0_5 = arith.constant 0 : index
    %5 = vector.load %arg5[%c0_4, %c0_5] : memref<4x1xf32, #tpu.memory_space<vmem>>, vector<4x1xf32>
    %6 = vector.broadcast %5 : vector<4x1xf32> to vector<4x256xf32>
    %7 = arith.addf %4, %6 : vector<4x256xf32>
    %c0_6 = arith.constant 0 : index
    %c0_7 = arith.constant 0 : index
    %c0_8 = arith.constant 0 : index
    %8 = vector.load %arg3[%c0_6, %c0_7, %c0_8] : memref<1x4x256xf32, #tpu.memory_space<vmem>>, vector<1x4x256xf32>
    %9 = vector.shape_cast %8 : vector<1x4x256xf32> to vector<4x256xf32>
    %10 = arith.addf %7, %9 : vector<4x256xf32>
    %cst = arith.constant 0.000000e+00 : f32
    %11 = vector.broadcast %cst : f32 to vector<4x256xf32>
    %12 = arith.maximumf %10, %11 : vector<4x256xf32>
    %c0_9 = arith.constant 0 : index
    %c0_10 = arith.constant 0 : index
    %c0_11 = arith.constant 0 : index
    %13 = vector.load %arg6[%c0_9, %c0_10, %c0_11] : memref<1x4x256xf32, #tpu.memory_space<vmem>>, vector<1x4x256xf32>
    %14 = vector.shape_cast %13 : vector<1x4x256xf32> to vector<4x256xf32>
    %15 = vector.shape_cast %12 : vector<4x256xf32> to vector<1x4x256xf32>
    tpu.vector_store %arg6[%c0_9, %c0_10, %c0_11], %15 {strides = array<i32>} : memref<1x4x256xf32, #tpu.memory_space<vmem>>, vector<1x4x256xf32>,
    return
  }
  func.func @transform_0(%arg0: i32, %arg1: i32) -> (i32, i32, i32) {
    %c0_i32 = arith.constant 0 : i32
    %c0_i32_0 = arith.constant 0 : i32
    return %arg0, %c0_i32, %arg1 : i32, i32, i32
  }
  func.func @transform_1(%arg0: i32, %arg1: i32) -> (i32, i32, i32) {
    %c0_i32 = arith.constant 0 : i32
    %c0_i32_0 = arith.constant 0 : i32
    return %arg0, %c0_i32, %arg1 : i32, i32, i32
  }
  func.func @transform_2(%arg0: i32, %arg1: i32) -> (i32, i32) {
    %c0_i32 = arith.constant 0 : i32
    %c0_i32_0 = arith.constant 0 : i32
    %c0_i32_1 = arith.constant 0 : i32
    return %c0_i32, %c0_i32_0 : i32, i32
  }
  func.func @transform_3(%arg0: i32, %arg1: i32) -> (i32, i32) {
    %c0_i32 = arith.constant 0 : i32
    %c0_i32_0 = arith.constant 0 : i32
    %c0_i32_1 = arith.constant 0 : i32
    return %c0_i32, %c0_i32_0 : i32, i32
  }
  func.func @transform_4(%arg0: i32, %arg1: i32) -> (i32, i32, i32) {
    %c0_i32 = arith.constant 0 : i32
    %c0_i32_0 = arith.constant 0 : i32
    return %arg0, %c0_i32, %arg1 : i32, i32, i32
  }
}

</mosaic_0001>

<llo_original>
// kernel: external_attention.3
$region0: #{external_attention.3}
  #allocation0 [shape = 'u32[]', space=smem, size = 0x4, offset = 0x4, fixed_abs, tag = 'smem constant byte address 0x4 - core index']
  #allocation1 [shape = 'u32[144,128]{1,0:T(1,128)}', space=vmem, size = 0x12000, scoped, tag = 'internal scratch']
  %s0 = inlined_call_operand.vmem [shape: f32[2,4,256], index: 0, kind: input, shape index: {}]
  %s1 = inlined_call_operand.vmem [shape: f32[2,4,256], index: 1, kind: input, shape index: {}]
  %s2 = inlined_call_operand.vmem [shape: f32[4,1], index: 2, kind: input, shape index: {}]
  %s3 = inlined_call_operand.vmem [shape: f32[4,1], index: 3, kind: input, shape index: {}]
  %s4 = inlined_call_operand.vmem [shape: f32[2,4,256], index: 4, kind: output, shape index: {}]
  %s5 = sld [smem:[#allocation0]]
  $region49: #{external_attention.3} parent=0
    _
  %s7 = ssub.s32 1, %s5
  %s8 = scalar_select 0, %s7, %s5
  loop: start=0, step=1, limit=4
  $region2: #{external_attention.3} parent=0 // loop_pre_header
    _
  $region3: #{external_attention.3} parent=0 // loop_header
    %s10 = sphi 0, %s14
    %p11 = scmp.ge.s32.totalorder %s10, 4
    %s17 = sphi 0, %s29
    %s18 = sphi 0, %s25
    %s19 = sphi 0, %s17
    %s20 = sphi 0, %s18
    %s21 = sphi 0, %s19
    %s22 = sphi 0, %s20
    %s34 = sphi 0, %s36
    %s37 = sphi 0, %s34
    %s38 = sphi 0, %s37
    %s54 = sphi 0, %s38
    %s62 = sphi 0, %s64
    %s65 = sphi 0, %s62
    %s66 = sphi 0, %s65
    %s82 = sphi 0, %s66
    %s86 = sphi 0, %s86
    %s88 = sphi 0, %s86
    %s89 = sphi 0, %s88
    %s103 = sphi 0, %s89
    %s107 = sphi 0, %s107
    %s109 = sphi 0, %s107
    %s110 = sphi 0, %s109
    %s124 = sphi 0, %s110
    %s132 = sphi 0, %s134
    %s135 = sphi 0, %s132
    %s136 = sphi 0, %s135
    %s152 = sphi 0, %s136
  $region4: #{external_attention.3} parent=0 // loop_header_branch
    %13 = sbr.rel (%p11) target = $region8
  $region5: #{external_attention.3} parent=0 // loop_body
    %s15 = ssub.s32 %s10, 1
    %s16 = ssub.s32 %s10, 2
    %s23 = sadd.s32 1, %s18
    %p24 = scmp.ge.s32.totalorder %s23, 1
    %s25 = scalar_select %p24, 0, %s23
    %s26 = sadd.s32 1, %s17
    %s27 = scalar_select %p24, %s26, %s17
    %p28 = scmp.ge.s32.totalorder %s27, 2
    %s29 = scalar_select %p28, 0, %s27
    %s30 = ssub.s32 %s17, %s29
    %s31 = ssub.s32 %s18, %s25
    %s32 = sor.u32 %s30, %s31
    %p33 = scmp.eq.s32.totalorder %s32, 0
    %s35 = sadd.s32 %s34, 1
    %s36 = scalar_select %p33, %s34, %s35
    %p39 = pneg %p33
    %p40 = scmp.eq.s32.totalorder %s10, 1
    %p41 = por %p39, %p40
    %p42 = scmp.ne.s32.totalorder %s34, %s37
    %p43 = scmp.eq.s32.totalorder %s10, 0
    %p44 = por %p42, %p43
    %p45 = scmp.ne.s32.totalorder %s34, %s37
    %p46 = scmp.eq.s32.totalorder %s15, 1
    %p47 = por %p45, %p46
    %p48 = scmp.ne.s32.totalorder %s37, %s38
    %p49 = scmp.eq.s32.totalorder %s15, 0
    %p50 = por %p48, %p49
    %p51 = scmp.ne.s32.totalorder %s37, %s38
    %p52 = scmp.eq.s32.totalorder %s16, 1
    %p53 = por %p51, %p52
    %p55 = scmp.ne.s32.totalorder %s38, %s54
    %p56 = scmp.eq.s32.totalorder %s16, 0
    %p57 = por %p55, %p56
    %s58 = ssub.s32 %s17, %s29
    %s59 = ssub.s32 %s18, %s25
    %s60 = sor.u32 %s58, %s59
    %p61 = scmp.eq.s32.totalorder %s60, 0
    %s63 = sadd.s32 %s62, 1
    %s64 = scalar_select %p61, %s62, %s63
    %p67 = pneg %p61
    %p68 = scmp.eq.s32.totalorder %s10, 1
    %p69 = por %p67, %p68
    %p70 = scmp.ne.s32.totalorder %s62, %s65
    %p71 = scmp.eq.s32.totalorder %s10, 0
    %p72 = por %p70, %p71
    %p73 = scmp.ne.s32.totalorder %s62, %s65
    %p74 = scmp.eq.s32.totalorder %s15, 1
    %p75 = por %p73, %p74
    %p76 = scmp.ne.s32.totalorder %s65, %s66
    %p77 = scmp.eq.s32.totalorder %s15, 0
    %p78 = por %p76, %p77
    %p79 = scmp.ne.s32.totalorder %s65, %s66
    %p80 = scmp.eq.s32.totalorder %s16, 1
    %p81 = por %p79, %p80
    %p83 = scmp.ne.s32.totalorder %s66, %s82
    %p84 = scmp.eq.s32.totalorder %s16, 0
    %p85 = por %p83, %p84
    %s87 = sadd.s32 %s86, 1
    %p90 = scmp.eq.s32.totalorder %s10, 1
    %p91 = scmp.ne.s32.totalorder %s86, %s88
    %p92 = scmp.eq.s32.totalorder %s10, 0
    %p93 = por %p91, %p92
    %p94 = scmp.ne.s32.totalorder %s86, %s88
    %p95 = scmp.eq.s32.totalorder %s15, 1
    %p96 = por %p94, %p95
    %p97 = scmp.ne.s32.totalorder %s88, %s89
    %p98 = scmp.eq.s32.totalorder %s15, 0
    %p99 = por %p97, %p98
    %p100 = scmp.ne.s32.totalorder %s88, %s89
    %p101 = scmp.eq.s32.totalorder %s16, 1
    %p102 = por %p100, %p101
    %p104 = scmp.ne.s32.totalorder %s89, %s103
    %p105 = scmp.eq.s32.totalorder %s16, 0
    %p106 = por %p104, %p105
    %s108 = sadd.s32 %s107, 1
    %p111 = scmp.eq.s32.totalorder %s10, 1
    %p112 = scmp.ne.s32.totalorder %s107, %s109
    %p113 = scmp.eq.s32.totalorder %s10, 0
    %p114 = por %p112, %p113
    %p115 = scmp.ne.s32.totalorder %s107, %s109
    %p116 = scmp.eq.s32.totalorder %s15, 1
    %p117 = por %p115, %p116
    %p118 = scmp.ne.s32.totalorder %s109, %s110
    %p119 = scmp.eq.s32.totalorder %s15, 0
    %p120 = por %p118, %p119
    %p121 = scmp.ne.s32.totalorder %s109, %s110
    %p122 = scmp.eq.s32.totalorder %s16, 1
    %p123 = por %p121, %p122
    %p125 = scmp.ne.s32.totalorder %s110, %s124
    %p126 = scmp.eq.s32.totalorder %s16, 0
    %p127 = por %p125, %p126
    %s128 = ssub.s32 %s17, %s29
    %s129 = ssub.s32 %s18, %s25
    %s130 = sor.u32 %s128, %s129
    %p131 = scmp.eq.s32.totalorder %s130, 0
    %s133 = sadd.s32 %s132, 1
    %s134 = scalar_select %p131, %s132, %s133
    %p137 = pneg %p131
    %p138 = scmp.eq.s32.totalorder %s10, 1
    %p139 = por %p137, %p138
    %p140 = scmp.ne.s32.totalorder %s132, %s135
    %p141 = scmp.eq.s32.totalorder %s10, 0
    %p142 = por %p140, %p141
    %p143 = scmp.ne.s32.totalorder %s132, %s135
    %p144 = scmp.eq.s32.totalorder %s15, 1
    %p145 = por %p143, %p144
    %p146 = scmp.ne.s32.totalorder %s135, %s136
    %p147 = scmp.eq.s32.totalorder %s15, 0
    %p148 = por %p146, %p147
    %p149 = scmp.ne.s32.totalorder %s135, %s136
    %p150 = scmp.eq.s32.totalorder %s16, 1
    %p151 = por %p149, %p150
    %p153 = scmp.ne.s32.totalorder %s136, %s152
    %p154 = scmp.eq.s32.totalorder %s16, 0
    %p155 = por %p153, %p154
    %p156 = scmp.le.s32.totalorder 1, %s10
    %p157 = scmp.lt.s32.totalorder %s10, 3
    %p158 = pnand %p156, %p157
    %p159 = pneg %p158
    // Predicated region
    $region9: #{external_attention.3} parent=5 // pred_check
      _
    $region10: #{external_attention.3} parent=5 // pred_check_branch
      %161 = sbr.rel (%p158) target = $region12
    $region11: #{external_attention.3} parent=5 // pred_region
      %s162 = ssub.s32 %s10, 1
      // Predicated region
      $region13: #{external_attention.3} parent=11 // pred_check
        %p163 = pneg %p99
      $region14: #{external_attention.3} parent=11 // pred_check_branch
        %165 = sbr.rel (%p163) target = $region16
      $region15: #{external_attention.3} parent=11 // pred_region
        _
      $region16: #{external_attention.3} parent=11 // pred_fallthru
        _
      // Predicated region
      $region17: #{external_attention.3} parent=11 // pred_check
        %p166 = pneg %p120
      $region18: #{external_attention.3} parent=11 // pred_check_branch
        %168 = sbr.rel (%p166) target = $region20
      $region19: #{external_attention.3} parent=11 // pred_region
        _
      $region20: #{external_attention.3} parent=11 // pred_fallthru
        _
    $region12: #{external_attention.3} parent=5 // pred_fallthru
      _
    %p169 = scmp.lt.s32.totalorder %s10, 2
    // Predicated region
    $region21: #{external_attention.3} parent=5 // pred_check
      %p170 = pneg %p169
    $region22: #{external_attention.3} parent=5 // pred_check_branch
      %172 = sbr.rel (%p170) target = $region24
    $region23: #{external_attention.3} parent=5 // pred_region
      // Predicated region
      $region25: #{external_attention.3} parent=23 // pred_check
        %p173 = pneg %p44
      $region26: #{external_attention.3} parent=23 // pred_check_branch
        %175 = sbr.rel (%p173) target = $region28
      $region27: #{external_attention.3} parent=23 // pred_region
        %s176 = smul.u32 2, %s18
        %p177 = scmp.lt.s32.totalorder %s17, 1
        %s178 = scalar_select %p177, %s17, 1
        %p179 = scmp.lt.s32.totalorder %s176, 1
        %s180 = scalar_select %p179, %s176, 1
        %s181 = smul.addr %s178, 2
        %s182 = sadd.s32 %s180, %s181
        %s183 = smul.addr %s182, 4
        %s184 = scalar_lea.vmem %s0, %s183
        %s185 = smul.u32 2, %s18
      $region28: #{external_attention.3} parent=23 // pred_fallthru
        _
      // Predicated region
      $region29: #{external_attention.3} parent=23 // pred_check
        %p186 = pneg %p72
      $region30: #{external_attention.3} parent=23 // pred_check_branch
        %188 = sbr.rel (%p186) target = $region32
      $region31: #{external_attention.3} parent=23 // pred_region
        %s189 = smul.u32 2, %s18
        %p190 = scmp.lt.s32.totalorder %s17, 1
        %s191 = scalar_select %p190, %s17, 1
        %p192 = scmp.lt.s32.totalorder %s189, 1
        %s193 = scalar_select %p192, %s189, 1
        %s194 = smul.addr %s191, 2
        %s195 = sadd.s32 %s193, %s194
        %s196 = smul.addr %s195, 4
        %s197 = scalar_lea.vmem %s1, %s196
        %s198 = smul.u32 2, %s18
      $region32: #{external_attention.3} parent=23 // pred_fallthru
        _
    $region24: #{external_attention.3} parent=5 // pred_fallthru
      _
    %p199 = scmp.le.s32.totalorder 1, %s10
    %p200 = scmp.lt.s32.totalorder %s10, 3
    %p201 = pnand %p199, %p200
    %p202 = pneg %p201
    // Predicated region
    $region33: #{external_attention.3} parent=5 // pred_check
      _
    $region34: #{external_attention.3} parent=5 // pred_check_branch
      %204 = sbr.rel (%p201) target = $region36
    $region35: #{external_attention.3} parent=5 // pred_region
      %s205 = ssub.s32 %s10, 1
      %s206 = smul.u32 2, %s20
      %p207 = scmp.lt.s32.totalorder %s19, 1
      %s208 = scalar_select %p207, %s19, 1
      %p209 = scmp.lt.s32.totalorder %s206, 1
      %s210 = scalar_select %p209, %s206, 1
      %s211 = smul.addr %s208, 2
      %s212 = sadd.s32 %s210, %s211
      %s213 = smul.addr %s212, 4
      %s214 = scalar_lea.vmem %s0, %s213
      %p215 = pneg %p50
      %p216 = pneg %p47
      %s217 = smul.u32 2, %s20
      %p218 = scmp.lt.s32.totalorder %s19, 1
      %s219 = scalar_select %p218, %s19, 1
      %p220 = scmp.lt.s32.totalorder %s217, 1
      %s221 = scalar_select %p220, %s217, 1
      %s222 = smul.addr %s219, 2
      %s223 = sadd.s32 %s221, %s222
      %s224 = smul.addr %s223, 4
      %s225 = scalar_lea.vmem %s1, %s224
      %p226 = pneg %p78
      %p227 = pneg %p75
      %p228 = pneg %p99
      %p229 = pneg %p96
      %p230 = pneg %p120
      %p231 = pneg %p117
      %p232 = pneg %p148
      %p233 = pneg %p145
      %s234 = smul.u32 2, %s20
      %p235 = scmp.lt.s32.totalorder %s19, 1
      %s236 = scalar_select %p235, %s19, 1
      %p237 = scmp.lt.s32.totalorder %s234, 1
      %s238 = scalar_select %p237, %s234, 1
      %s239 = smul.addr %s236, 2
      %s240 = sadd.s32 %s238, %s239
      %s241 = smul.addr %s240, 4
      %s242 = scalar_lea.vmem %s4, %s241
      %s243 = smul.u32 2, %s20
      %p244 = scmp.lt.s32.totalorder %s19, 1
      %s245 = scalar_select %p244, %s19, 1
      %p246 = scmp.lt.s32.totalorder %s243, 1
      %s247 = scalar_select %p246, %s243, 1
      %s248 = smul.addr %s245, 2
      %s249 = sadd.s32 %s247, %s248
      %s250 = smul.addr %s249, 4
      %s251 = scalar_lea.vmem %s0, %s250
      %s252 = smul.u32 2, %s20
      %s253 = smul.u32 2, %s20
      %p254 = scmp.lt.s32.totalorder %s19, 1
      %s255 = scalar_select %p254, %s19, 1
      %p256 = scmp.lt.s32.totalorder %s253, 1
      %s257 = scalar_select %p256, %s253, 1
      %s258 = smul.addr %s255, 2
      %s259 = sadd.s32 %s257, %s258
      %s260 = smul.addr %s259, 4
      %s261 = scalar_lea.vmem %s1, %s260
      %s262 = smul.u32 2, %s20
      %s263 = smul.u32 2, %s20
      %p264 = scmp.lt.s32.totalorder %s19, 1
      %s265 = scalar_select %p264, %s19, 1
      %p266 = scmp.lt.s32.totalorder %s263, 1
      %s267 = scalar_select %p266, %s263, 1
      %s268 = smul.addr %s265, 2
      %s269 = sadd.s32 %s267, %s268
      %s270 = smul.addr %s269, 4
      %s271 = scalar_lea.vmem %s4, %s270
      %s272 = smul.u32 2, %s20
      %v273 = vld [vmem:[%s251] sm:$0xff]
      %v274 = vld [vmem:[%s2] sm:$0xf]
      %276 = vset.pattern.permute.xlu0 0
      %277 = vperm.xlu0 %276, %v274
      %v278 = vpop.permute.xlu0 %277
      %v280 = vunpack.c.l.s4 839922192
      %v281 = vunpack.c.0.s8 %v280
      %v282 = vlaneseq
      %v283 = vshrl.u32 %v282, 7
      %v284 = vsub.s32 %v281, %v283
      %v285 = vrot.slane %v278, %v284
      %v287 = vmul.f32 %v273, %v285
      %v288 = vld [vmem:[%s3] sm:$0xf]
      %290 = vset.pattern.permute.xlu0 0
      %291 = vperm.xlu0 %290, %v288
      %v292 = vpop.permute.xlu0 %291
      %v294 = vunpack.c.l.s4 839922192
      %v295 = vunpack.c.0.s8 %v294
      %v296 = vlaneseq
      %v297 = vshrl.u32 %v296, 7
      %v298 = vsub.s32 %v295, %v297
      %v299 = vrot.slane %v292, %v298
      %v301 = vadd.f32 %v287, %v299
      %v302 = vld [vmem:[%s261] sm:$0xff]
      %v303 = vadd.f32 %v301, %v302
      %v304 = vmax.f32 %v303, 0.0
      %305 = vst [vmem:[%s271] sm:$0xff] %v304
      %s306 = smul.u32 2, %s20
      %p307 = scmp.lt.s32.totalorder %s19, 1
      %s308 = scalar_select %p307, %s19, 1
      %p309 = scmp.lt.s32.totalorder %s306, 1
      %s310 = scalar_select %p309, %s306, 1
      %s311 = smul.addr %s308, 2
      %s312 = sadd.s32 %s310, %s311
      %s313 = smul.addr %s312, 4
      %s314 = scalar_lea.vmem %s4, %s313
      // Predicated region
      $region37: #{external_attention.3} parent=35 // pred_check
        %p315 = pneg %p145
      $region38: #{external_attention.3} parent=35 // pred_check_branch
        %317 = sbr.rel (%p315) target = $region40
      $region39: #{external_attention.3} parent=35 // pred_region
        %s318 = smul.u32 2, %s20
      $region40: #{external_attention.3} parent=35 // pred_fallthru
        _
    $region36: #{external_attention.3} parent=5 // pred_fallthru
      _
    %p319 = scmp.le.s32.totalorder 2, %s10
    // Predicated region
    $region41: #{external_attention.3} parent=5 // pred_check
      %p320 = pneg %p319
    $region42: #{external_attention.3} parent=5 // pred_check_branch
      %322 = sbr.rel (%p320) target = $region44
    $region43: #{external_attention.3} parent=5 // pred_region
      %s323 = ssub.s32 %s10, 2
      // Predicated region
      $region45: #{external_attention.3} parent=43 // pred_check
        %p324 = pneg %p151
      $region46: #{external_attention.3} parent=43 // pred_check_branch
        %326 = sbr.rel (%p324) target = $region48
      $region47: #{external_attention.3} parent=43 // pred_region
        %s327 = smul.u32 2, %s22
        %p328 = scmp.lt.s32.totalorder %s21, 1
        %s329 = scalar_select %p328, %s21, 1
        %p330 = scmp.lt.s32.totalorder %s327, 1
        %s331 = scalar_select %p330, %s327, 1
        %s332 = smul.addr %s329, 2
        %s333 = sadd.s32 %s331, %s332
        %s334 = smul.addr %s333, 4
        %s335 = scalar_lea.vmem %s4, %s334
      $region48: #{external_attention.3} parent=43 // pred_fallthru
        _
    $region44: #{external_attention.3} parent=5 // pred_fallthru
      _
  $region6: #{external_attention.3} parent=0 // loop_footer
    %s14 = sadd.s32 1, %s10
  $region7: #{external_attention.3} parent=0 // loop_footer_branch
    %9 = sbr.rel target = $region3
  $region8: #{external_attention.3} parent=0 // loop_exit
    _

// kernel: external_attention.2
$region0: #{external_attention.2}
  #allocation0 [shape = 'u32[]', space=smem, size = 0x4, offset = 0x4, fixed_abs, tag = 'smem constant byte address 0x4 - core index']
  #allocation1 [shape = 'u32[144,128]{1,0:T(1,128)}', space=vmem, size = 0x12000, scoped, tag = 'internal scratch']
  %s0 = inlined_call_operand.vmem [shape: f32[2,4,256], index: 0, kind: input, shape index: {}]
  %s1 = inlined_call_operand.vmem [shape: f32[64,4], index: 1, kind: input, shape index: {}]
  %s2 = inlined_call_operand.vmem [shape: f32[64,1], index: 2, kind: input, shape index: {}]
  %s3 = inlined_call_operand.vmem [shape: f32[4,64], index: 3, kind: input, shape index: {}]
  %s4 = inlined_call_operand.vmem [shape: f32[2,4,256], index: 4, kind: output, shape index: {0}]
  %s5 = inlined_call_operand.vmem [shape: f32[2,1,4,2], index: 5, kind: output, shape index: {1}]
  %6 = xla_tuple %s4, %s5
  %s7 = sld [smem:[#allocation0]]
  $region57: #{external_attention.2} parent=0
    _
  %s9 = ssub.s32 1, %s7
  %s10 = scalar_select 0, %s9, %s7
  loop: start=0, step=1, limit=4
  $region2: #{external_attention.2} parent=0 // loop_pre_header
    _
  $region3: #{external_attention.2} parent=0 // loop_header
    %s12 = sphi 0, %s16
    %p13 = scmp.ge.s32.totalorder %s12, 4
    %s19 = sphi 0, %s31
    %s20 = sphi 0, %s27
    %s21 = sphi 0, %s19
    %s22 = sphi 0, %s20
    %s23 = sphi 0, %s21
    %s24 = sphi 0, %s22
    %s36 = sphi 0, %s38
    %s39 = sphi 0, %s36
    %s40 = sphi 0, %s39
    %s56 = sphi 0, %s40
    %s60 = sphi 0, %s60
    %s62 = sphi 0, %s60
    %s63 = sphi 0, %s62
    %s77 = sphi 0, %s63
    %s81 = sphi 0, %s81
    %s83 = sphi 0, %s81
    %s84 = sphi 0, %s83
    %s98 = sphi 0, %s84
    %s102 = sphi 0, %s102
    %s104 = sphi 0, %s102
    %s105 = sphi 0, %s104
    %s119 = sphi 0, %s105
    %s127 = sphi 0, %s129
    %s130 = sphi 0, %s127
    %s131 = sphi 0, %s130
    %s147 = sphi 0, %s131
    %s155 = sphi 0, %s157
    %s158 = sphi 0, %s155
    %s159 = sphi 0, %s158
    %s175 = sphi 0, %s159
  $region4: #{external_attention.2} parent=0 // loop_header_branch
    %15 = sbr.rel (%p13) target = $region8
  $region5: #{external_attention.2} parent=0 // loop_body
    %s17 = ssub.s32 %s12, 1
    %s18 = ssub.s32 %s12, 2
    %s25 = sadd.s32 1, %s20
    %p26 = scmp.ge.s32.totalorder %s25, 1
    %s27 = scalar_select %p26, 0, %s25
    %s28 = sadd.s32 1, %s19
    %s29 = scalar_select %p26, %s28, %s19
    %p30 = scmp.ge.s32.totalorder %s29, 2
    %s31 = scalar_select %p30, 0, %s29
    %s32 = ssub.s32 %s19, %s31
    %s33 = ssub.s32 %s20, %s27
    %s34 = sor.u32 %s32, %s33
    %p35 = scmp.eq.s32.totalorder %s34, 0
    %s37 = sadd.s32 %s36, 1
    %s38 = scalar_select %p35, %s36, %s37
    %p41 = pneg %p35
    %p42 = scmp.eq.s32.totalorder %s12, 1
    %p43 = por %p41, %p42
    %p44 = scmp.ne.s32.totalorder %s36, %s39
    %p45 = scmp.eq.s32.totalorder %s12, 0
    %p46 = por %p44, %p45
    %p47 = scmp.ne.s32.totalorder %s36, %s39
    %p48 = scmp.eq.s32.totalorder %s17, 1
    %p49 = por %p47, %p48
    %p50 = scmp.ne.s32.totalorder %s39, %s40
    %p51 = scmp.eq.s32.totalorder %s17, 0
    %p52 = por %p50, %p51
    %p53 = scmp.ne.s32.totalorder %s39, %s40
    %p54 = scmp.eq.s32.totalorder %s18, 1
    %p55 = por %p53, %p54
    %p57 = scmp.ne.s32.totalorder %s40, %s56
    %p58 = scmp.eq.s32.totalorder %s18, 0
    %p59 = por %p57, %p58
    %s61 = sadd.s32 %s60, 1
    %p64 = scmp.eq.s32.totalorder %s12, 1
    %p65 = scmp.ne.s32.totalorder %s60, %s62
    %p66 = scmp.eq.s32.totalorder %s12, 0
    %p67 = por %p65, %p66
    %p68 = scmp.ne.s32.totalorder %s60, %s62
    %p69 = scmp.eq.s32.totalorder %s17, 1
    %p70 = por %p68, %p69
    %p71 = scmp.ne.s32.totalorder %s62, %s63
    %p72 = scmp.eq.s32.totalorder %s17, 0
    %p73 = por %p71, %p72
    %p74 = scmp.ne.s32.totalorder %s62, %s63
    %p75 = scmp.eq.s32.totalorder %s18, 1
    %p76 = por %p74, %p75
    %p78 = scmp.ne.s32.totalorder %s63, %s77
    %p79 = scmp.eq.s32.totalorder %s18, 0
    %p80 = por %p78, %p79
    %s82 = sadd.s32 %s81, 1
    %p85 = scmp.eq.s32.totalorder %s12, 1
    %p86 = scmp.ne.s32.totalorder %s81, %s83
    %p87 = scmp.eq.s32.totalorder %s12, 0
    %p88 = por %p86, %p87
    %p89 = scmp.ne.s32.totalorder %s81, %s83
    %p90 = scmp.eq.s32.totalorder %s17, 1
    %p91 = por %p89, %p90
    %p92 = scmp.ne.s32.totalorder %s83, %s84
    %p93 = scmp.eq.s32.totalorder %s17, 0
    %p94 = por %p92, %p93
    %p95 = scmp.ne.s32.totalorder %s83, %s84
    %p96 = scmp.eq.s32.totalorder %s18, 1
    %p97 = por %p95, %p96
    %p99 = scmp.ne.s32.totalorder %s84, %s98
    %p100 = scmp.eq.s32.totalorder %s18, 0
    %p101 = por %p99, %p100
    %s103 = sadd.s32 %s102, 1
    %p106 = scmp.eq.s32.totalorder %s12, 1
    %p107 = scmp.ne.s32.totalorder %s102, %s104
    %p108 = scmp.eq.s32.totalorder %s12, 0
    %p109 = por %p107, %p108
    %p110 = scmp.ne.s32.totalorder %s102, %s104
    %p111 = scmp.eq.s32.totalorder %s17, 1
    %p112 = por %p110, %p111
    %p113 = scmp.ne.s32.totalorder %s104, %s105
    %p114 = scmp.eq.s32.totalorder %s17, 0
    %p115 = por %p113, %p114
    %p116 = scmp.ne.s32.totalorder %s104, %s105
    %p117 = scmp.eq.s32.totalorder %s18, 1
    %p118 = por %p116, %p117
    %p120 = scmp.ne.s32.totalorder %s105, %s119
    %p121 = scmp.eq.s32.totalorder %s18, 0
    %p122 = por %p120, %p121
    %s123 = ssub.s32 %s19, %s31
    %s124 = ssub.s32 %s20, %s27
    %s125 = sor.u32 %s123, %s124
    %p126 = scmp.eq.s32.totalorder %s125, 0
    %s128 = sadd.s32 %s127, 1
    %s129 = scalar_select %p126, %s127, %s128
    %p132 = pneg %p126
    %p133 = scmp.eq.s32.totalorder %s12, 1
    %p134 = por %p132, %p133
    %p135 = scmp.ne.s32.totalorder %s127, %s130
    %p136 = scmp.eq.s32.totalorder %s12, 0
    %p137 = por %p135, %p136
    %p138 = scmp.ne.s32.totalorder %s127, %s130
    %p139 = scmp.eq.s32.totalorder %s17, 1
    %p140 = por %p138, %p139
    %p141 = scmp.ne.s32.totalorder %s130, %s131
    %p142 = scmp.eq.s32.totalorder %s17, 0
    %p143 = por %p141, %p142
    %p144 = scmp.ne.s32.totalorder %s130, %s131
    %p145 = scmp.eq.s32.totalorder %s18, 1
    %p146 = por %p144, %p145
    %p148 = scmp.ne.s32.totalorder %s131, %s147
    %p149 = scmp.eq.s32.totalorder %s18, 0
    %p150 = por %p148, %p149
    %s151 = ssub.s32 %s19, %s31
    %s152 = ssub.s32 %s20, %s27
    %s153 = sor.u32 %s151, %s152
    %p154 = scmp.eq.s32.totalorder %s153, 0
    %s156 = sadd.s32 %s155, 1
    %s157 = scalar_select %p154, %s155, %s156
    %p160 = pneg %p154
    %p161 = scmp.eq.s32.totalorder %s12, 1
    %p162 = por %p160, %p161
    %p163 = scmp.ne.s32.totalorder %s155, %s158
    %p164 = scmp.eq.s32.totalorder %s12, 0
    %p165 = por %p163, %p164
    %p166 = scmp.ne.s32.totalorder %s155, %s158
    %p167 = scmp.eq.s32.totalorder %s17, 1
    %p168 = por %p166, %p167
    %p169 = scmp.ne.s32.totalorder %s158, %s159
    %p170 = scmp.eq.s32.totalorder %s17, 0
    %p171 = por %p169, %p170
    %p172 = scmp.ne.s32.totalorder %s158, %s159
    %p173 = scmp.eq.s32.totalorder %s18, 1
    %p174 = por %p172, %p173
    %p176 = scmp.ne.s32.totalorder %s159, %s175
    %p177 = scmp.eq.s32.totalorder %s18, 0
    %p178 = por %p176, %p177
    %p179 = scmp.le.s32.totalorder 1, %s12
    %p180 = scmp.lt.s32.totalorder %s12, 3
    %p181 = pnand %p179, %p180
    %p182 = pneg %p181
    // Predicated region
    $region9: #{external_attention.2} parent=5 // pred_check
      _
    $region10: #{external_attention.2} parent=5 // pred_check_branch
      %184 = sbr.rel (%p181) target = $region12
    $region11: #{external_attention.2} parent=5 // pred_region
      %s185 = ssub.s32 %s12, 1
      // Predicated region
      $region13: #{external_attention.2} parent=11 // pred_check
        %p186 = pneg %p73
      $region14: #{external_attention.2} parent=11 // pred_check_branch
        %188 = sbr.rel (%p186) target = $region16
      $region15: #{external_attention.2} parent=11 // pred_region
        _
      $region16: #{external_attention.2} parent=11 // pred_fallthru
        _
      // Predicated region
      $region17: #{external_attention.2} parent=11 // pred_check
        %p189 = pneg %p94
      $region18: #{external_attention.2} parent=11 // pred_check_branch
        %191 = sbr.rel (%p189) target = $region20
      $region19: #{external_attention.2} parent=11 // pred_region
        _
      $region20: #{external_attention.2} parent=11 // pred_fallthru
        _
      // Predicated region
      $region21: #{external_attention.2} parent=11 // pred_check
        %p192 = pneg %p115
      $region22: #{external_attention.2} parent=11 // pred_check_branch
        %194 = sbr.rel (%p192) target = $region24
      $region23: #{external_attention.2} parent=11 // pred_region
        _
      $region24: #{external_attention.2} parent=11 // pred_fallthru
        _
    $region12: #{external_attention.2} parent=5 // pred_fallthru
      _
    %p195 = scmp.lt.s32.totalorder %s12, 2
    // Predicated region
    $region25: #{external_attention.2} parent=5 // pred_check
      %p196 = pneg %p195
    $region26: #{external_attention.2} parent=5 // pred_check_branch
      %198 = sbr.rel (%p196) target = $region28
    $region27: #{external_attention.2} parent=5 // pred_region
      // Predicated region
      $region29: #{external_attention.2} parent=27 // pred_check
        %p199 = pneg %p46
      $region30: #{external_attention.2} parent=27 // pred_check_branch
        %201 = sbr.rel (%p199) target = $region32
      $region31: #{external_attention.2} parent=27 // pred_region
        %s202 = smul.u32 2, %s20
        %p203 = scmp.lt.s32.totalorder %s19, 1
        %s204 = scalar_select %p203, %s19, 1
        %p205 = scmp.lt.s32.totalorder %s202, 1
        %s206 = scalar_select %p205, %s202, 1
        %s207 = smul.addr %s204, 2
        %s208 = sadd.s32 %s206, %s207
        %s209 = smul.addr %s208, 4
        %s210 = scalar_lea.vmem %s0, %s209
        %s211 = smul.u32 2, %s20
      $region32: #{external_attention.2} parent=27 // pred_fallthru
        _
    $region28: #{external_attention.2} parent=5 // pred_fallthru
      _
    %p212 = scmp.le.s32.totalorder 1, %s12
    %p213 = scmp.lt.s32.totalorder %s12, 3
    %p214 = pnand %p212, %p213
    %p215 = pneg %p214
    // Predicated region
    $region33: #{external_attention.2} parent=5 // pred_check
      _
    $region34: #{external_attention.2} parent=5 // pred_check_branch
      %217 = sbr.rel (%p214) target = $region36
    $region35: #{external_attention.2} parent=5 // pred_region
      %s218 = ssub.s32 %s12, 1
      %s219 = smul.u32 2, %s22
      %p220 = scmp.lt.s32.totalorder %s21, 1
      %s221 = scalar_select %p220, %s21, 1
      %p222 = scmp.lt.s32.totalorder %s219, 1
      %s223 = scalar_select %p222, %s219, 1
      %s224 = smul.addr %s221, 2
      %s225 = sadd.s32 %s223, %s224
      %s226 = smul.addr %s225, 4
      %s227 = scalar_lea.vmem %s0, %s226
      %p228 = pneg %p52
      %p229 = pneg %p49
      %p230 = pneg %p73
      %p231 = pneg %p70
      %p232 = pneg %p94
      %p233 = pneg %p91
      %p234 = pneg %p115
      %p235 = pneg %p112
      %p236 = pneg %p143
      %p237 = pneg %p140
      %s238 = smul.u32 2, %s22
      %p239 = scmp.lt.s32.totalorder %s21, 1
      %s240 = scalar_select %p239, %s21, 1
      %p241 = scmp.lt.s32.totalorder %s238, 1
      %s242 = scalar_select %p241, %s238, 1
      %s243 = smul.addr %s240, 2
      %s244 = sadd.s32 %s242, %s243
      %s245 = smul.addr %s244, 4
      %s246 = scalar_lea.vmem %s4, %s245
      %p247 = pneg %p171
      %p248 = pneg %p168
      %p249 = scmp.lt.s32.totalorder %s21, 1
      %s250 = scalar_select %p249, %s21, 1
      %p251 = scmp.lt.s32.totalorder %s22, 0
      %s252 = scalar_select %p251, %s22, 0
      %s253 = sadd.s32 %s252, %s250
      %s254 = smul.addr %s253, 4
      %s255 = scalar_lea.vmem %s5, %s254
      %s256 = smul.u32 2, %s22
      %p257 = scmp.lt.s32.totalorder %s21, 1
      %s258 = scalar_select %p257, %s21, 1
      %p259 = scmp.lt.s32.totalorder %s256, 1
      %s260 = scalar_select %p259, %s256, 1
      %s261 = smul.addr %s258, 2
      %s262 = sadd.s32 %s260, %s261
      %s263 = smul.addr %s262, 4
      %s264 = scalar_lea.vmem %s0, %s263
      %s265 = smul.u32 2, %s22
      %s266 = smul.u32 2, %s22
      %p267 = scmp.lt.s32.totalorder %s21, 1
      %s268 = scalar_select %p267, %s21, 1
      %p269 = scmp.lt.s32.totalorder %s266, 1
      %s270 = scalar_select %p269, %s266, 1
      %s271 = smul.addr %s268, 2
      %s272 = sadd.s32 %s270, %s271
      %s273 = smul.addr %s272, 4
      %s274 = scalar_lea.vmem %s4, %s273
      %s275 = smul.u32 2, %s22
      %p276 = scmp.lt.s32.totalorder %s21, 1
      %s277 = scalar_select %p276, %s21, 1
      %p278 = scmp.lt.s32.totalorder %s22, 0
      %s279 = scalar_select %p278, %s22, 0
      %s280 = sadd.s32 %s279, %s277
      %s281 = smul.addr %s280, 4
      %s282 = scalar_lea.vmem %s5, %s281
      %v283 = vld [vmem:[%s264] sm:$0xff]
      %v284 = vld [vmem:[%s1] sm:$0xff]
      %v285 = vld [vmem:[%s1 + $0x8] sm:$0xff]
      %v286 = vld [vmem:[%s1 + $0x10] sm:$0xff]
      %v287 = vld [vmem:[%s1 + $0x18] sm:$0xff]
      %v288 = vld [vmem:[%s1 + $0x20] sm:$0xff]
      %v289 = vld [vmem:[%s1 + $0x28] sm:$0xff]
      %v290 = vld [vmem:[%s1 + $0x30] sm:$0xff]
      %v291 = vld [vmem:[%s1 + $0x38] sm:$0xff]
      %v292 = vld [vmem:[%s2] sm:$0xff]
      %v293 = vld [vmem:[%s2 + $0x8] sm:$0xff]
      %v294 = vld [vmem:[%s2 + $0x10] sm:$0xff]
      %v295 = vld [vmem:[%s2 + $0x18] sm:$0xff]
      %v296 = vld [vmem:[%s2 + $0x20] sm:$0xff]
      %v297 = vld [vmem:[%s2 + $0x28] sm:$0xff]
      %v298 = vld [vmem:[%s2 + $0x30] sm:$0xff]
      %v299 = vld [vmem:[%s2 + $0x38] sm:$0xff]
      %301 = vset.pattern.permute.xlu0 0
      %302 = vperm.xlu0 %301, %v292
      %v303 = vpop.permute.xlu0 %302
      %306 = vset.pattern.permute.xlu0 0
      %307 = vperm.xlu0 %306, %v293
      %v308 = vpop.permute.xlu0 %307
      %311 = vset.pattern.permute.xlu0 0
      %312 = vperm.xlu0 %311, %v294
      %v313 = vpop.permute.xlu0 %312
      %316 = vset.pattern.permute.xlu0 0
      %317 = vperm.xlu0 %316, %v295
      %v318 = vpop.permute.xlu0 %317
      %321 = vset.pattern.permute.xlu0 0
      %322 = vperm.xlu0 %321, %v296
      %v323 = vpop.permute.xlu0 %322
      %326 = vset.pattern.permute.xlu0 0
      %327 = vperm.xlu0 %326, %v297
      %v328 = vpop.permute.xlu0 %327
      %331 = vset.pattern.permute.xlu0 0
      %332 = vperm.xlu0 %331, %v298
      %v333 = vpop.permute.xlu0 %332
      %336 = vset.pattern.permute.xlu0 0
      %337 = vperm.xlu0 %336, %v299
      %v338 = vpop.permute.xlu0 %337
      %v341 = vcombine.high %v283, %v283
      %vm342 = vcmask 31744
      %v344 = vsel %vm342, %v284, 0
      %v347 = vsel %vm342, %v285, 0
      %v350 = vsel %vm342, %v286, 0
      %v353 = vsel %vm342, %v287, 0
      %v356 = vsel %vm342, %v288, 0
      %v359 = vsel %vm342, %v289, 0
      %v362 = vsel %vm342, %v290, 0
      %v365 = vsel %vm342, %v291, 0
      %vm367 = vcmask 1043456
      %v368 = vsel %vm367, %v283, 0
      %v370 = vsel %vm367, %v341, 0
      %372 = vmatprep.subr.mxu0 0.0
      %373 = vmatpush1.msra.mxu0 0.0
      %374 = vmatprep.subr.mxu0 0.0
      %375 = vmatpush1.msra.mxu0 0.0
      %376 = vmatprep.subr.mxu0 0.0
      %377 = vmatpush1.msra.mxu0 0.0
      %378 = vmatprep.subr.mxu0 0.0
      %379 = vmatpush1.msra.mxu0 0.0
      %380 = vmatprep.subr.mxu0 0.0
      %381 = vmatpush1.msra.mxu0 0.0
      %382 = vmatprep.subr.mxu0 0.0
      %383 = vmatpush1.msra.mxu0 0.0
      %384 = vmatprep.subr.mxu0 0.0
      %385 = vmatpush1.msra.mxu0 0.0
      %386 = vmatprep.subr.mxu0 0.0
      %387 = vmatpush1.msra.mxu0 0.0
      %388 = vmatprep.subr.mxu0 0.0
      %389 = vmatpush1.msra.mxu0 0.0
      %390 = vmatprep.subr.mxu0 0.0
      %391 = vmatpush1.msra.mxu0 0.0
      %392 = vmatprep.subr.mxu0 0.0
      %393 = vmatpush1.msra.mxu0 0.0
      %394 = vmatprep.subr.mxu0 0.0
      %395 = vmatpush1.msra.mxu0 0.0
      %396 = vmatprep.subr.mxu0 0.0
      %397 = vmatpush1.msra.mxu0 0.0
      %398 = vmatprep.subr.mxu0 0.0
      %399 = vmatpush1.msra.mxu0 0.0
      %400 = vmatprep.subr.mxu0 0.0
      %401 = vmatpush1.msra.mxu0 0.0
      %402 = vmatprep.subr.mxu0 %v370
      %403 = vmatpush1.msra.mxu0 %v368
      %404 = vmatprep.subr.mxu0 0.0
      %405 = vmatpush2.msra.mxu0 0.0
      %406 = vmatprep.subr.mxu0 0.0
      %407 = vmatpush2.msra.mxu0 0.0
      %408 = vmatprep.subr.mxu0 0.0
      %409 = vmatpush2.msra.mxu0 0.0
      %410 = vmatprep.subr.mxu0 0.0
      %411 = vmatpush2.msra.mxu0 0.0
      %412 = vmatprep.subr.mxu0 0.0
      %413 = vmatpush2.msra.mxu0 0.0
      %414 = vmatprep.subr.mxu0 0.0
      %415 = vmatpush2.msra.mxu0 0.0
      %416 = vmatprep.subr.mxu0 0.0
      %417 = vmatpush2.msra.mxu0 0.0
      %418 = vmatprep.subr.mxu0 0.0
      %419 = vmatpush2.msra.mxu0 0.0
      %420 = vmatprep.subr.mxu0 0.0
      %421 = vmatpush2.msra.mxu0 0.0
      %422 = vmatprep.subr.mxu0 0.0
      %423 = vmatpush2.msra.mxu0 0.0
      %424 = vmatprep.subr.mxu0 0.0
      %425 = vmatpush2.msra.mxu0 0.0
      %426 = vmatprep.subr.mxu0 0.0
      %427 = vmatpush2.msra.mxu0 0.0
      %428 = vmatprep.subr.mxu0 0.0
      %429 = vmatpush2.msra.mxu0 0.0
      %430 = vmatprep.subr.mxu0 0.0
      %431 = vmatpush2.msra.mxu0 0.0
      %432 = vmatprep.subr.mxu0 0.0
      %433 = vmatpush2.msra.mxu0 0.0
      %434 = vmatprep.subr.mxu0 0.0
      %435 = vmatpush2.msra.mxu0 0.0
      %436 = vmatprep.mubr.f32.mxu0 0.0
      %437 = vmatmul.mubr.f32.gmra.mxu0 %v344
      %v438 = vpop.f32.mrf.mxu0
      %v439 = vadd.f32 %v303, %v438
      %v440 = vpop.f32.mrf.mxu0
      %v441 = vadd.f32 %v303, %v440
      %442 = vmatprep.mubr.f32.mxu0 0.0
      %443 = vmatmul.mubr.f32.gmra.mxu0 %v347
      %v444 = vpop.f32.mrf.mxu0
      %v445 = vadd.f32 %v308, %v444
      %v446 = vpop.f32.mrf.mxu0
      %v447 = vadd.f32 %v308, %v446
      %448 = vmatprep.mubr.f32.mxu0 0.0
      %449 = vmatmul.mubr.f32.gmra.mxu0 %v350
      %v450 = vpop.f32.mrf.mxu0
      %v451 = vadd.f32 %v313, %v450
      %v452 = vpop.f32.mrf.mxu0
      %v453 = vadd.f32 %v313, %v452
      %454 = vmatprep.mubr.f32.mxu0 0.0
      %455 = vmatmul.mubr.f32.gmra.mxu0 %v353
      %v456 = vpop.f32.mrf.mxu0
      %v457 = vadd.f32 %v318, %v456
      %v458 = vpop.f32.mrf.mxu0
      %v459 = vadd.f32 %v318, %v458
      %460 = vmatprep.mubr.f32.mxu0 0.0
      %461 = vmatmul.mubr.f32.gmra.mxu0 %v356
      %v462 = vpop.f32.mrf.mxu0
      %v463 = vadd.f32 %v323, %v462
      %v464 = vpop.f32.mrf.mxu0
      %v465 = vadd.f32 %v323, %v464
      %466 = vmatprep.mubr.f32.mxu0 0.0
      %467 = vmatmul.mubr.f32.gmra.mxu0 %v359
      %v468 = vpop.f32.mrf.mxu0
      %v469 = vadd.f32 %v328, %v468
      %v470 = vpop.f32.mrf.mxu0
      %v471 = vadd.f32 %v328, %v470
      %472 = vmatprep.mubr.f32.mxu0 0.0
      %473 = vmatmul.mubr.f32.gmra.mxu0 %v362
      %v474 = vpop.f32.mrf.mxu0
      %v475 = vadd.f32 %v333, %v474
      %v476 = vpop.f32.mrf.mxu0
      %v477 = vadd.f32 %v333, %v476
      %478 = vmatprep.mubr.f32.mxu0 0.0
      %479 = vmatmul.mubr.f32.gmra.mxu0 %v365
      %v480 = vpop.f32.mrf.mxu0
      %v481 = vadd.f32 %v338, %v480
      %v482 = vpop.f32.mrf.mxu0
      %v483 = vadd.f32 %v338, %v482
      %484 = vdwg.mxu0
      %v485 = vmax.f32 %v439, %v451
      %v486 = vmax.f32 %v445, %v457
      %v487 = vmax.f32 %v485, %v463
      %v488 = vmax.f32 %v486, %v469
      %v489 = vmax.f32 %v487, %v475
      %v490 = vmax.f32 %v488, %v481
      %v491 = vmax.f32 %v489, %v490
      %v492 = vrot.slane %v491, 4
      %v493 = vmax.f32 %v491, %v492
      %v494 = vrot.slane %v493, 2
      %v495 = vmax.f32 %v493, %v494
      %v496 = vrot.slane %v495, 1
      %v497 = vmax.f32 %v495, %v496
      %v498 = vmax.f32 %v441, %v453
      %v499 = vmax.f32 %v447, %v459
      %v500 = vmax.f32 %v498, %v465
      %v501 = vmax.f32 %v499, %v471
      %v502 = vmax.f32 %v500, %v477
      %v503 = vmax.f32 %v501, %v483
      %v504 = vmax.f32 %v502, %v503
      %v505 = vrot.slane %v504, 4
      %v506 = vmax.f32 %v504, %v505
      %v507 = vrot.slane %v506, 2
      %v508 = vmax.f32 %v506, %v507
      %v509 = vrot.slane %v508, 1
      %v510 = vmax.f32 %v508, %v509
      %v511 = vsub.f32 %v439, %v497
      %v512 = vsub.f32 %v441, %v510
      %v513 = vsub.f32 %v445, %v497
      %v514 = vsub.f32 %v447, %v510
      %v515 = vsub.f32 %v451, %v497
      %v516 = vsub.f32 %v453, %v510
      %v517 = vsub.f32 %v457, %v497
      %v518 = vsub.f32 %v459, %v510
      %v519 = vsub.f32 %v463, %v497
      %v520 = vsub.f32 %v465, %v510
      %v521 = vsub.f32 %v469, %v497
      %v522 = vsub.f32 %v471, %v510
      %v523 = vsub.f32 %v475, %v497
      %v524 = vsub.f32 %v477, %v510
      %v525 = vsub.f32 %v481, %v497
      %v526 = vsub.f32 %v483, %v510
      %v527 = vmul.f32 %v511, 1.442695
      %v528 = vpow.pop %v527
      %v529 = vmul.f32 %v512, 1.442695
      %v530 = vpow.pop %v529
      %v531 = vmul.f32 %v513, 1.442695
      %v532 = vpow.pop %v531
      %v533 = vmul.f32 %v514, 1.442695
      %v534 = vpow.pop %v533
      %v535 = vmul.f32 %v515, 1.442695
      %v536 = vpow.pop %v535
      %v537 = vmul.f32 %v516, 1.442695
      %v538 = vpow.pop %v537
      %v539 = vmul.f32 %v517, 1.442695
      %v540 = vpow.pop %v539
      %v541 = vmul.f32 %v518, 1.442695
      %v542 = vpow.pop %v541
      %v543 = vmul.f32 %v519, 1.442695
      %v544 = vpow.pop %v543
      %v545 = vmul.f32 %v520, 1.442695
      %v546 = vpow.pop %v545
      %v547 = vmul.f32 %v521, 1.442695
      %v548 = vpow.pop %v547
      %v549 = vmul.f32 %v522, 1.442695
      %v550 = vpow.pop %v549
      %v551 = vmul.f32 %v523, 1.442695
      %v552 = vpow.pop %v551
      %v553 = vmul.f32 %v524, 1.442695
      %v554 = vpow.pop %v553
      %v555 = vmul.f32 %v525, 1.442695
      %v556 = vpow.pop %v555
      %v557 = vmul.f32 %v526, 1.442695
      %v558 = vpow.pop %v557
      %v559 = vadd.f32 %v528, %v532
      %v560 = vadd.f32 %v559, %v536
      %v561 = vadd.f32 %v560, %v540
      %v562 = vadd.f32 %v561, %v544
      %v563 = vadd.f32 %v562, %v548
      %v564 = vadd.f32 %v563, %v552
      %v565 = vadd.f32 %v564, %v556
      %v566 = vrot.slane %v565, 4
      %v567 = vadd.f32 %v565, %v566
      %v568 = vrot.slane %v567, 2
      %v569 = vadd.f32 %v567, %v568
      %v570 = vrot.slane %v569, 1
      %v571 = vadd.f32 %v569, %v570
      %v572 = vadd.f32 %v530, %v534
      %v573 = vadd.f32 %v572, %v538
      %v574 = vadd.f32 %v573, %v542
      %v575 = vadd.f32 %v574, %v546
      %v576 = vadd.f32 %v575, %v550
      %v577 = vadd.f32 %v576, %v554
      %v578 = vadd.f32 %v577, %v558
      %v579 = vrot.slane %v578, 4
      %v580 = vadd.f32 %v578, %v579
      %v581 = vrot.slane %v580, 2
      %v582 = vadd.f32 %v580, %v581
      %v583 = vrot.slane %v582, 1
      %v584 = vadd.f32 %v582, %v583
      %v585 = vrcp.pop %v571
      %v586 = vrcp.pop %v584
      %v587 = vmul.f32 %v528, %v585
      %v588 = vmul.f32 %v530, %v586
      %v589 = vmul.f32 %v532, %v585
      %v590 = vmul.f32 %v534, %v586
      %v591 = vmul.f32 %v536, %v585
      %v592 = vmul.f32 %v538, %v586
      %v593 = vmul.f32 %v540, %v585
      %v594 = vmul.f32 %v542, %v586
      %v595 = vmul.f32 %v544, %v585
      %v596 = vmul.f32 %v546, %v586
      %v597 = vmul.f32 %v548, %v585
      %v598 = vmul.f32 %v550, %v586
      %v599 = vmul.f32 %v552, %v585
      %v600 = vmul.f32 %v554, %v586
      %v601 = vmul.f32 %v556, %v585
      %v602 = vmul.f32 %v558, %v586
      %v603 = vadd.f32 %v587, %v589
      %v604 = vadd.f32 %v603, %v591
      %v605 = vadd.f32 %v604, %v593
      %v606 = vadd.f32 %v605, %v595
      %v607 = vadd.f32 %v606, %v597
      %v608 = vadd.f32 %v607, %v599
      %v609 = vadd.f32 %v608, %v601
      %v610 = vrot.slane %v609, 4
      %v611 = vadd.f32 %v609, %v610
      %v612 = vrot.slane %v611, 2
      %v613 = vadd.f32 %v611, %v612
      %v614 = vrot.slane %v613, 1
      %v615 = vadd.f32 %v613, %v614
      %v616 = vadd.f32 %v588, %v590
      %v617 = vadd.f32 %v616, %v592
      %v618 = vadd.f32 %v617, %v594
      %v619 = vadd.f32 %v618, %v596
      %v620 = vadd.f32 %v619, %v598
      %v621 = vadd.f32 %v620, %v600
      %v622 = vadd.f32 %v621, %v602
      %v623 = vrot.slane %v622, 4
      %v624 = vadd.f32 %v622, %v623
      %v625 = vrot.slane %v624, 2
      %v626 = vadd.f32 %v624, %v625
      %v627 = vrot.slane %v626, 1
      %v628 = vadd.f32 %v626, %v627
      %v629 = vadd.f32 %v615, 1e-09
      %v630 = vadd.f32 %v628, 1e-09
      %v631 = vrcp.pop %v629
      %v632 = vrcp.pop %v630
      %v633 = vmul.f32 %v587, %v631
      %v634 = vmul.f32 %v588, %v632
      %v635 = vmul.f32 %v589, %v631
      %v636 = vmul.f32 %v590, %v632
      %v637 = vmul.f32 %v591, %v631
      %v638 = vmul.f32 %v592, %v632
      %v639 = vmul.f32 %v593, %v631
      %v640 = vmul.f32 %v594, %v632
      %v641 = vmul.f32 %v595, %v631
      %v642 = vmul.f32 %v596, %v632
      %v643 = vmul.f32 %v597, %v631
      %v644 = vmul.f32 %v598, %v632
      %v645 = vmul.f32 %v599, %v631
      %v646 = vmul.f32 %v600, %v632
      %v647 = vmul.f32 %v601, %v631
      %v648 = vmul.f32 %v602, %v632
      %v649 = vld [vmem:[%s3] sm:$0xf]
      %vm650 = vcmask 523264
      %v652 = vsel %vm650, %v649, 0
      %654 = vmatprep.subr.mxu0 0.0
      %655 = vmatpush1.msra.mxu0 0.0
      %656 = vmatprep.subr.mxu0 0.0
      %657 = vmatpush1.msra.mxu0 0.0
      %658 = vmatprep.subr.mxu0 0.0
      %659 = vmatpush1.msra.mxu0 0.0
      %660 = vmatprep.subr.mxu0 0.0
      %661 = vmatpush1.msra.mxu0 0.0
      %662 = vmatprep.subr.mxu0 0.0
      %663 = vmatpush1.msra.mxu0 0.0
      %664 = vmatprep.subr.mxu0 0.0
      %665 = vmatpush1.msra.mxu0 0.0
      %666 = vmatprep.subr.mxu0 0.0
      %667 = vmatpush1.msra.mxu0 0.0
      %668 = vmatprep.subr.mxu0 0.0
      %669 = vmatpush1.msra.mxu0 0.0
      %670 = vmatprep.subr.mxu0 %v648
      %671 = vmatpush1.msra.mxu0 %v647
      %672 = vmatprep.subr.mxu0 %v646
      %673 = vmatpush1.msra.mxu0 %v645
      %674 = vmatprep.subr.mxu0 %v644
      %675 = vmatpush1.msra.mxu0 %v643
      %676 = vmatprep.subr.mxu0 %v642
      %677 = vmatpush1.msra.mxu0 %v641
      %678 = vmatprep.subr.mxu0 %v640
      %679 = vmatpush1.msra.mxu0 %v639
      %680 = vmatprep.subr.mxu0 %v638
      %681 = vmatpush1.msra.mxu0 %v637
      %682 = vmatprep.subr.mxu0 %v636
      %683 = vmatpush1.msra.mxu0 %v635
      %684 = vmatprep.subr.mxu0 %v634
      %685 = vmatpush1.msra.mxu0 %v633
      %686 = vmatprep.subr.mxu0 0.0
      %687 = vmatpush2.msra.mxu0 0.0
      %688 = vmatprep.subr.mxu0 0.0
      %689 = vmatpush2.msra.mxu0 0.0
      %690 = vmatprep.subr.mxu0 0.0
      %691 = vmatpush2.msra.mxu0 0.0
      %692 = vmatprep.subr.mxu0 0.0
      %693 = vmatpush2.msra.mxu0 0.0
      %694 = vmatprep.subr.mxu0 0.0
      %695 = vmatpush2.msra.mxu0 0.0
      %696 = vmatprep.subr.mxu0 0.0
      %697 = vmatpush2.msra.mxu0 0.0
      %698 = vmatprep.subr.mxu0 0.0
      %699 = vmatpush2.msra.mxu0 0.0
      %700 = vmatprep.subr.mxu0 0.0
      %701 = vmatpush2.msra.mxu0 0.0
      %702 = vmatprep.subr.mxu0 0.0
      %703 = vmatpush2.msra.mxu0 0.0
      %704 = vmatprep.subr.mxu0 0.0
      %705 = vmatpush2.msra.mxu0 0.0
      %706 = vmatprep.subr.mxu0 0.0
      %707 = vmatpush2.msra.mxu0 0.0
      %708 = vmatprep.subr.mxu0 0.0
      %709 = vmatpush2.msra.mxu0 0.0
      %710 = vmatprep.subr.mxu0 0.0
      %711 = vmatpush2.msra.mxu0 0.0
      %712 = vmatprep.subr.mxu0 0.0
      %713 = vmatpush2.msra.mxu0 0.0
      %714 = vmatprep.subr.mxu0 0.0
      %715 = vmatpush2.msra.mxu0 0.0
      %716 = vmatprep.subr.mxu0 0.0
      %717 = vmatpush2.msra.mxu0 0.0
      %718 = vmatprep.mubr.f32.mxu0 0.0
      %719 = vmatmul.mubr.f32.gmra.mxu0 %v652
      %v720 = vpop.f32.mrf.mxu0
      %v721 = vadd.f32 0.0, %v720
      %v722 = vpop.f32.mrf.mxu0
      %v723 = vadd.f32 0.0, %v722
      %724 = vdwg.mxu0
      %v727 = vcombine.low %v721, %v723
      %729 = vst [vmem:[%s274] sm:$0xff] %v727
      %v730 = vsel %vm367, %v721, 0.0
      %v731 = vsel %vm367, %v723, 0.0
      %v732 = vadd.f32 %v730, %v731
      %733 = vadd.xlane.f32.xlu0 %v732
      %v734 = vpop.xlane.xlu0 %733
      %vm735 = vcmask 3072
      %736 = vst.msk [vmem:[%s282] sm:$0xf] %vm735, %v734
      %v737 = vmul.f32 %v721, %v721
      %v738 = vmul.f32 %v723, %v723
      %v739 = vsel %vm367, %v737, 0.0
      %v740 = vsel %vm367, %v738, 0.0
      %v741 = vadd.f32 %v739, %v740
      %742 = vadd.xlane.f32.xlu0 %v741
      %v743 = vpop.xlane.xlu0 %742
      %vm744 = vcmask 11272
      %745 = vst.msk [vmem:[%s282] sm:$0xf] %vm744, %v743
      %s746 = smul.u32 2, %s22
      %p747 = scmp.lt.s32.totalorder %s21, 1
      %s748 = scalar_select %p747, %s21, 1
      %p749 = scmp.lt.s32.totalorder %s746, 1
      %s750 = scalar_select %p749, %s746, 1
      %s751 = smul.addr %s748, 2
      %s752 = sadd.s32 %s750, %s751
      %s753 = smul.addr %s752, 4
      %s754 = scalar_lea.vmem %s4, %s753
      %p755 = scmp.lt.s32.totalorder %s21, 1
      %s756 = scalar_select %p755, %s21, 1
      %p757 = scmp.lt.s32.totalorder %s22, 0
      %s758 = scalar_select %p757, %s22, 0
      %s759 = sadd.s32 %s758, %s756
      %s760 = smul.addr %s759, 4
      %s761 = scalar_lea.vmem %s5, %s760
      // Predicated region
      $region37: #{external_attention.2} parent=35 // pred_check
        %p762 = pneg %p140
      $region38: #{external_attention.2} parent=35 // pred_check_branch
        %764 = sbr.rel (%p762) target = $region40
      $region39: #{external_attention.2} parent=35 // pred_region
        %s765 = smul.u32 2, %s22
      $region40: #{external_attention.2} parent=35 // pred_fallthru
        _
      // Predicated region
      $region41: #{external_attention.2} parent=35 // pred_check
        %p766 = pneg %p168
      $region42: #{external_attention.2} parent=35 // pred_check_branch
        %768 = sbr.rel (%p766) target = $region44
      $region43: #{external_attention.2} parent=35 // pred_region
        _
      $region44: #{external_attention.2} parent=35 // pred_fallthru
        _
    $region36: #{external_attention.2} parent=5 // pred_fallthru
      _
    %p769 = scmp.le.s32.totalorder 2, %s12
    // Predicated region
    $region45: #{external_attention.2} parent=5 // pred_check
      %p770 = pneg %p769
    $region46: #{external_attention.2} parent=5 // pred_check_branch
      %772 = sbr.rel (%p770) target = $region48
    $region47: #{external_attention.2} parent=5 // pred_region
      %s773 = ssub.s32 %s12, 2
      // Predicated region
      $region49: #{external_attention.2} parent=47 // pred_check
        %p774 = pneg %p146
      $region50: #{external_attention.2} parent=47 // pred_check_branch
        %776 = sbr.rel (%p774) target = $region52
      $region51: #{external_attention.2} parent=47 // pred_region
        %s777 = smul.u32 2, %s24
        %p778 = scmp.lt.s32.totalorder %s23, 1
        %s779 = scalar_select %p778, %s23, 1
        %p780 = scmp.lt.s32.totalorder %s777, 1
        %s781 = scalar_select %p780, %s777, 1
        %s782 = smul.addr %s779, 2
        %s783 = sadd.s32 %s781, %s782
        %s784 = smul.addr %s783, 4
        %s785 = scalar_lea.vmem %s4, %s784
      $region52: #{external_attention.2} parent=47 // pred_fallthru
        _
      // Predicated region
      $region53: #{external_attention.2} parent=47 // pred_check
        %p786 = pneg %p174
      $region54: #{external_attention.2} parent=47 // pred_check_branch
        %788 = sbr.rel (%p786) target = $region56
      $region55: #{external_attention.2} parent=47 // pred_region
        %p789 = scmp.lt.s32.totalorder %s23, 1
        %s790 = scalar_select %p789, %s23, 1
        %p791 = scmp.lt.s32.totalorder %s24, 0
        %s792 = scalar_select %p791, %s24, 0
        %s793 = sadd.s32 %s792, %s790
        %s794 = smul.addr %s793, 4
        %s795 = scalar_lea.vmem %s5, %s794
      $region56: #{external_attention.2} parent=47 // pred_fallthru
        _
    $region48: #{external_attention.2} parent=5 // pred_fallthru
      _
  $region6: #{external_attention.2} parent=0 // loop_footer
    %s16 = sadd.s32 1, %s12
  $region7: #{external_attention.2} parent=0 // loop_footer_branch
    %11 = sbr.rel target = $region3
  $region8: #{external_attention.2} parent=0 // loop_exit
    _

</llo_original>
